<compile_context>
chip_gen: v7x
topology: tpu7x:2x2x1
jax: 0.10.0
libtpu: 0.0.40
codegen_flags: <defaults>
</compile_context>

<pallas_src>
import jax
import jax.numpy as jnp
import numpy as np
from jax.experimental import pallas as pl
from jax.experimental.pallas import tpu as pltpu


def _wlp_kernel(w_ref, x_ref, o_ref):
    """Weighted layer sum over token 0 for one batch tile.

    w_ref: SMEM (L,) float32   -- pre-normalized layer weights (sum == 1)
    x_ref: VMEM (L, bt, H)     -- token-0 hidden states of all selected layers
    o_ref: VMEM (bt, H)        -- weighted average over the layer axis
    """
    num_layers = x_ref.shape[0]

    def body(l, acc):
        # Per-layer read keeps the live vreg set to one (bt, H) slice;
        # w_ref[l] is an SMEM scalar load (effectively free).
        return acc + w_ref[l] * x_ref[l].astype(jnp.float32)

    acc0 = jnp.zeros(o_ref.shape, jnp.float32)
    acc = jax.lax.fori_loop(0, num_layers, body, acc0, unroll=True)
    o_ref[...] = acc.astype(o_ref.dtype)


def _pick_batch_tile(B):
    """Largest multiple-of-8 tile (<=512) that divides B; else the full batch."""
    if B % 8 == 0:
        for bt in (512, 256, 128, 64, 32, 16, 8):
            if B % bt == 0:
                return bt
    return B


def weighted_layer_pooling(all_hidden_states, layer_weights, layer_start=4):
    """JAX wrapper.

    all_hidden_states: (num_hidden_layers + 1, B, S, H)
    layer_weights:     (num_hidden_layers + 1 - layer_start,)
    returns:           (B, H)  ==  weighted_average[:, 0] of the PyTorch module
    """
    # Glue: layer slice + token-0 slice happen before the kernel so the kernel
    # only touches the bytes it actually needs.
    x = all_hidden_states[layer_start:, :, 0, :]          # (L, B, H)
    L, B, H = x.shape

    # Pre-normalize weights: sum_l (w_l / W) * x_l  ==  (sum_l w_l * x_l) / W
    w = (layer_weights / jnp.sum(layer_weights)).astype(jnp.float32)

    bt = _pick_batch_tile(B)
    grid = (B // bt,)

    out = pl.pallas_call(
        _wlp_kernel,
        out_shape=jax.ShapeDtypeStruct((B, H), all_hidden_states.dtype),
        grid_spec=pltpu.PrefetchScalarGridSpec(
            num_scalar_prefetch=0,
            grid=grid,
            in_specs=[
                # small weight vector lives in SMEM, read as scalars in-kernel
                pl.BlockSpec(memory_space=pltpu.MemorySpace.SMEM),
                # all layers, one batch tile, full hidden (lane-dense)
                pl.BlockSpec((L, bt, H), lambda b: (0, b, 0)),
            ],
            out_specs=pl.BlockSpec((bt, H), lambda b: (b, 0)),
        ),
        compiler_params=pltpu.CompilerParams(
            dimension_semantics=("parallel",),
        ),
    )(w, x)
    return out


def _reference(all_hidden_states, layer_weights, layer_start=4):
    x = all_hidden_states[layer_start:]
    wf = layer_weights[:, None, None, None].astype(jnp.float32)
    wa = (wf * x.astype(jnp.float32)).sum(axis=0) / layer_weights.sum()
    return wa[:, 0].astype(all_hidden_states.dtype)


if __name__ == "__main__":
    # Small, module-consistent shapes.
    num_hidden_layers = 6
    layer_start = 4
    batch, seq, hidden = 2, 8, 32
    n_layers_total = num_hidden_layers + 1          # 7 hidden-state tensors
    n_selected = n_layers_total - layer_start       # 3 layer weights

    key = jax.random.PRNGKey(0)
    all_hidden_states = jax.random.normal(
        key, (n_layers_total, batch, seq, hidden), dtype=jnp.float32
    )
    # Deterministic parameter init matching nn.Parameter(torch.tensor([1]*n, float))
    layer_weights = jnp.ones((n_selected,), dtype=jnp.float32)

    out = weighted_layer_pooling(all_hidden_states, layer_weights, layer_start)
    out = jax.block_until_ready(out)

    ref = _reference(all_hidden_states, layer_weights, layer_start)
    assert out.shape == (batch, hidden), out.shape
    np.testing.assert_allclose(np.asarray(out), np.asarray(ref), rtol=1e-5, atol=1e-5)

    print("KERNEL_OK")
</pallas_src>

<mosaic_0001>
module attributes {stable_mosaic.version = 11 : i64} {
  func.func @_wlp_kernel(%arg0: i32, %arg1: memref<3xf32, #tpu.memory_space<smem>>, %arg2: memref<3x2x32xf32, #tpu.memory_space<vmem>>, %arg3: memref<2x32xf32, #tpu.memory_space<vmem>>) attributes {dimension_semantics = [#tpu.dimension_semantics<parallel>], iteration_bounds = array<i64: 1>, scalar_prefetch = 0 : i64, scratch_operands = 0 : i64, tpu.core_type = #tpu.core_type<tc>, window_params = [{transform_indices = @transform_0, window_bounds = array<i64: 3>}, {transform_indices = @transform_1, window_bounds = array<i64: 3, 2, 32>}, {transform_indices = @transform_2, window_bounds = array<i64: 2, 32>}]} {
    %cst = arith.constant 0.000000e+00 : f32
    %0 = vector.broadcast %cst : f32 to vector<2x32xf32>
    %c0_i32 = arith.constant 0 : i32
    %1 = arith.index_cast %c0_i32 : i32 to index
    %2 = memref.load %arg1[%1] : memref<3xf32, #tpu.memory_space<smem>>
    %3 = arith.index_cast %c0_i32 : i32 to index
    %c0 = arith.constant 0 : index
    %c0_0 = arith.constant 0 : index
    %4 = vector.load %arg2[%3, %c0, %c0_0] : memref<3x2x32xf32, #tpu.memory_space<vmem>>, vector<1x2x32xf32>
    %5 = vector.shape_cast %4 : vector<1x2x32xf32> to vector<2x32xf32>
    %6 = vector.broadcast %2 : f32 to vector<2x32xf32>
    %7 = arith.mulf %6, %5 : vector<2x32xf32>
    %8 = arith.addf %0, %7 : vector<2x32xf32>
    %c1_i32 = arith.constant 1 : i32
    %9 = arith.index_cast %c1_i32 : i32 to index
    %10 = memref.load %arg1[%9] : memref<3xf32, #tpu.memory_space<smem>>
    %11 = arith.index_cast %c1_i32 : i32 to index
    %c0_1 = arith.constant 0 : index
    %c0_2 = arith.constant 0 : index
    %12 = vector.load %arg2[%11, %c0_1, %c0_2] : memref<3x2x32xf32, #tpu.memory_space<vmem>>, vector<1x2x32xf32>
    %13 = vector.shape_cast %12 : vector<1x2x32xf32> to vector<2x32xf32>
    %14 = vector.broadcast %10 : f32 to vector<2x32xf32>
    %15 = arith.mulf %14, %13 : vector<2x32xf32>
    %16 = arith.addf %8, %15 : vector<2x32xf32>
    %c2_i32 = arith.constant 2 : i32
    %17 = arith.index_cast %c2_i32 : i32 to index
    %18 = memref.load %arg1[%17] : memref<3xf32, #tpu.memory_space<smem>>
    %19 = arith.index_cast %c2_i32 : i32 to index
    %c0_3 = arith.constant 0 : index
    %c0_4 = arith.constant 0 : index
    %20 = vector.load %arg2[%19, %c0_3, %c0_4] : memref<3x2x32xf32, #tpu.memory_space<vmem>>, vector<1x2x32xf32>
    %21 = vector.shape_cast %20 : vector<1x2x32xf32> to vector<2x32xf32>
    %22 = vector.broadcast %18 : f32 to vector<2x32xf32>
    %23 = arith.mulf %22, %21 : vector<2x32xf32>
    %24 = arith.addf %16, %23 : vector<2x32xf32>
    %c3_i32 = arith.constant 3 : i32
    %c0_5 = arith.constant 0 : index
    %c0_6 = arith.constant 0 : index
    %25 = vector.load %arg3[%c0_5, %c0_6] : memref<2x32xf32, #tpu.memory_space<vmem>>, vector<2x32xf32>
    tpu.vector_store %arg3[%c0_5, %c0_6], %24 {strides = array<i32>} : memref<2x32xf32, #tpu.memory_space<vmem>>, vector<2x32xf32>,
    return
  }
  func.func @transform_0(%arg0: i32) -> i32 {
    %c0_i32 = arith.constant 0 : i32
    %c0_i32_0 = arith.constant 0 : i32
    return %c0_i32 : i32
  }
  func.func @transform_1(%arg0: i32) -> (i32, i32, i32) {
    %c0_i32 = arith.constant 0 : i32
    %c0_i32_0 = arith.constant 0 : i32
    %c0_i32_1 = arith.constant 0 : i32
    return %c0_i32, %arg0, %c0_i32_0 : i32, i32, i32
  }
  func.func @transform_2(%arg0: i32) -> (i32, i32) {
    %c0_i32 = arith.constant 0 : i32
    %c0_i32_0 = arith.constant 0 : i32
    return %arg0, %c0_i32 : i32, i32
  }
}

</mosaic_0001>

<llo_original>
// kernel: tpu_custom_call.1
$region0: #{tpu_custom_call.1}
  #allocation0 [shape = 'u32[]', space=smem, size = 0x4, offset = 0x4, fixed_abs, tag = 'smem constant byte address 0x4 - core index']
  #allocation1 [shape = 'u32[144,128]{1,0:T(1,128)}', space=vmem, size = 0x12000, scoped, tag = 'internal scratch']
  %s0 = inlined_call_operand.hbm [shape: f32[3], index: 0, kind: input, shape index: {}]
  %s1 = inlined_call_operand.hbm [shape: f32[3,2,32], index: 1, kind: input, shape index: {}]
  %s2 = inlined_call_operand.hbm [shape: f32[2,32], index: 2, kind: output, shape index: {}]
  %s3 = sld [smem:[#allocation0]]
  $region26: #{tpu_custom_call.1} parent=0
    _
  %s5 = ssub.s32 1, %s3
  %s6 = scalar_select 0, %s5, %s3
  $region1: #{tpu_custom_call.1} parent=0
    #allocation2 [shape = 'u8[512]{0}', space=smem, size = 0x200, scoped, tag = 'input window, operand 0, single buffered']
    #allocation3 [shape = 's32[1]{0}', space=sflag, size = 0x4, scoped, tag = 'scoped memory for tpu_custom_call.1']
    #allocation4 [shape = 's32[1]{0}', space=sflag, size = 0x4, scoped, tag = 'scoped memory for tpu_custom_call.1']
    #allocation5 [shape = 's32[1]{0}', space=sflag, size = 0x4, scoped, tag = 'scoped memory for tpu_custom_call.1']
    #allocation6 [shape = 'u8[3072]{0}', space=vmem, size = 0xc00, scoped, tag = 'input window, operand 1, single buffered']
    #allocation7 [shape = 'u8[1024]{0}', space=vmem, size = 0x400, scoped, tag = 'output window, operand 0, single buffered']
    %7 = vsyncpa [#allocation5], 0
    %8 = vsyncpa [#allocation3], 0
    %9 = vsyncpa [#allocation4], 0
    // Predicated region
    $region2: #{tpu_custom_call.1} parent=1 // pred_check
      _
    $region3: #{tpu_custom_call.1} parent=1 // pred_check_branch
      %11 = sbr.rel (0) target = $region5
    $region4: #{tpu_custom_call.1} parent=1 // pred_region
      %s13 = ssub.s32 16, 16
      %14 = vsyncadd [#allocation5], %s13
      %17 = dma.hbm_to_smem %s0, 16, [#allocation2], [#allocation5]
    $region5: #{tpu_custom_call.1} parent=1 // pred_fallthru
      _
    // Predicated region
    $region6: #{tpu_custom_call.1} parent=1 // pred_check
      _
    $region7: #{tpu_custom_call.1} parent=1 // pred_check_branch
      %19 = sbr.rel (0) target = $region9
    $region8: #{tpu_custom_call.1} parent=1 // pred_region
      %s21 = ssub.s32 96, 96
      %22 = vsyncadd [#allocation3], %s21
      %s23 = sshll.u32 [#allocation6], 4
      %s24 = int_to_ptr.vmem [resolvable:$true] %s23
      %29 = dma.hbm_to_vmem [thread:$0]  %s1, 96, %s24, [#allocation3], 32, 32, 2
    $region9: #{tpu_custom_call.1} parent=1 // pred_fallthru
      _
    // Predicated region
    $region10: #{tpu_custom_call.1} parent=1 // pred_check
      _
    $region11: #{tpu_custom_call.1} parent=1 // pred_check_branch
      %31 = sbr.rel (0) target = $region13
    $region12: #{tpu_custom_call.1} parent=1 // pred_region
      %32 = dma.done [#allocation5], 16
    $region13: #{tpu_custom_call.1} parent=1 // pred_fallthru
      _
    // Predicated region
    $region14: #{tpu_custom_call.1} parent=1 // pred_check
      _
    $region15: #{tpu_custom_call.1} parent=1 // pred_check_branch
      %34 = sbr.rel (0) target = $region17
    $region16: #{tpu_custom_call.1} parent=1 // pred_region
      %35 = dma.done [#allocation3], 96
    $region17: #{tpu_custom_call.1} parent=1 // pred_fallthru
      _
    %36 = sfence
    %s37 = sld [smem:[#allocation2]]
    %v38 = vld [vmem:[#allocation6] sm:$0x3]
    %v39 = vstv %s37
    %v40 = vmul.f32 %v39, %v38
    %v41 = vadd.f32 %v40, 0.0
    %s42 = sld [smem:[#allocation2 + $0x1]]
    %s43 = scalar_lea.vmem [#allocation6], 2
    %v44 = vld [vmem:[%s43] sm:$0x3]
    %v45 = vstv %s42
    %v46 = vmul.f32 %v45, %v44
    %v47 = vadd.f32 %v41, %v46
    %s48 = sld [smem:[#allocation2 + $0x2]]
    %s49 = scalar_lea.vmem [#allocation6], 4
    %v50 = vld [vmem:[%s49] sm:$0x3]
    %v51 = vstv %s48
    %v52 = vmul.f32 %v51, %v50
    %v53 = vadd.f32 %v47, %v52
    %vm54 = vcmask 254976
    %55 = vst.msk [vmem:[#allocation7] sm:$0x3] %vm54, %v53
    // Predicated region
    $region18: #{tpu_custom_call.1} parent=1 // pred_check
      _
    $region19: #{tpu_custom_call.1} parent=1 // pred_check_branch
      %57 = sbr.rel (0) target = $region21
    $region20: #{tpu_custom_call.1} parent=1 // pred_region
      %s59 = ssub.s32 32, 32
      %60 = vsyncadd [#allocation4], %s59
      %s62 = sshll.u32 [#allocation7], 4
      %s63 = int_to_ptr.vmem [resolvable:$true] %s62
      %65 = dma.vmem_to_hbm [thread:$0]  %s63, 32, %s2, [#allocation4]
    $region21: #{tpu_custom_call.1} parent=1 // pred_fallthru
      _
    // Predicated region
    $region22: #{tpu_custom_call.1} parent=1 // pred_check
      _
    $region23: #{tpu_custom_call.1} parent=1 // pred_check_branch
      %67 = sbr.rel (0) target = $region25
    $region24: #{tpu_custom_call.1} parent=1 // pred_region
      %68 = dma.done [#allocation4], 32
    $region25: #{tpu_custom_call.1} parent=1 // pred_fallthru
      _
    %69 = vsyncpa [#allocation3], 1
    %70 = vsyncpa [#allocation4], 1
    %71 = vsyncpa [#allocation5], 1

</llo_original>
